<compile_context>
chip_gen: v7x
topology: tpu7x:2x2x1
jax: 0.10.0
libtpu: 0.0.40
codegen_flags: <defaults>
</compile_context>

<pallas_src>
import jax
import jax.numpy as jnp
import numpy as np
from jax.experimental import pallas as pl
from jax.experimental.pallas import tpu as pltpu

# -----------------------------------------------------------------------------
# Layer sizes (from the PyTorch module) and their lane-padded counterparts.
# -----------------------------------------------------------------------------
LAYER_DIMS = [27, 48, 72, 160, 100, 60, 1]          # 6 Linear layers
PADDED_OUT = [128, 128, 256, 128, 128, 128]         # per-layer padded widths
LANE = 128


def _round_up(n, m):
    return (n + m - 1) // m * m


# -----------------------------------------------------------------------------
# Kernel: fused 6x (matmul + bias + activation) for one batch tile.
#   x_ref : (TM, 27)         weights: (in_pad, out_pad)    biases: (1, out_pad)
#   o_ref : (TM, 128)  -- final output value replicated across all 128 lanes
# -----------------------------------------------------------------------------
def bpnet_kernel(x_ref,
                 w1_ref, b1_ref, w2_ref, b2_ref, w3_ref, b3_ref,
                 w4_ref, b4_ref, w5_ref, b5_ref, w6_ref, b6_ref,
                 o_ref):
    h = x_ref[...]                                                 # (TM, 27)

    # encoder: Linear+Tanh x3
    h = jnp.tanh(jnp.dot(h, w1_ref[...],
                         preferred_element_type=jnp.float32) + b1_ref[...])
    h = jnp.tanh(jnp.dot(h, w2_ref[...],
                         preferred_element_type=jnp.float32) + b2_ref[...])
    h = jnp.tanh(jnp.dot(h, w3_ref[...],
                         preferred_element_type=jnp.float32) + b3_ref[...])

    # decoder: Linear+Tanh x2, Linear+Sigmoid
    h = jnp.tanh(jnp.dot(h, w4_ref[...],
                         preferred_element_type=jnp.float32) + b4_ref[...])
    h = jnp.tanh(jnp.dot(h, w5_ref[...],
                         preferred_element_type=jnp.float32) + b5_ref[...])
    # last layer's weight column is broadcast across 128 lanes -> z is the
    # scalar output replicated lane-wise; stores are full-width / unmasked.
    z = jnp.dot(h, w6_ref[...],
                preferred_element_type=jnp.float32) + b6_ref[...]   # (TM, 128)
    o_ref[...] = jax.nn.sigmoid(z).astype(o_ref.dtype)


# -----------------------------------------------------------------------------
# Wrapper-side weight preparation: zero-pad to lane-friendly shapes.
# Padded bias entries and padded weight rows are zero, so tanh(0)=0 on padded
# lanes and nothing leaks into downstream layers (results are unchanged).
# -----------------------------------------------------------------------------
def pad_params(params):
    padded = []
    n = len(params)
    for idx, (w, b) in enumerate(params):
        fan_in, fan_out = w.shape
        pin = fan_in if idx == 0 else PADDED_OUT[idx - 1]
        pout = PADDED_OUT[idx]
        if idx < n - 1:
            wp = jnp.zeros((pin, pout), jnp.float32).at[:fan_in, :fan_out].set(w)
            bp = jnp.zeros((1, pout), jnp.float32).at[:, :fan_out].set(b)
        else:
            # Final 60->1 layer: replicate the single output column across all
            # 128 lanes (rows >= 60 stay zero) so the output tile is lane-dense.
            wp = jnp.zeros((pin, pout), jnp.float32).at[:fan_in, :].set(
                jnp.broadcast_to(w, (fan_in, pout)))
            bp = jnp.broadcast_to(b, (1, pout)).astype(jnp.float32)
        padded.append((wp, bp))
    return padded


# -----------------------------------------------------------------------------
# Forward pass.
# -----------------------------------------------------------------------------
def bpnet_forward(x, params, *, tm=512):
    """x: (B, 27) float32.  params: list of (W(in,out), b(1,out)) pairs."""
    B, F_in = x.shape
    assert F_in == LAYER_DIMS[0]

    padded = pad_params(params)

    # Batch tiling: one big tile for small batches, otherwise tm-sized tiles
    # (batch zero-padded up to a multiple of the tile; padded rows sliced off).
    tm = max(8, _round_up(tm, 8))
    if B <= tm:
        tm_eff = _round_up(max(B, 1), 8)
        grid = 1
    else:
        tm_eff = tm
        grid = pl.cdiv(B, tm_eff)
    B_pad = grid * tm_eff
    if B_pad != B:
        x = jnp.pad(x, ((0, B_pad - B), (0, 0)))

    # x tile: batch tiled (sublane axis), feature dim full (27 = full dim).
    in_specs = [pl.BlockSpec((tm_eff, F_in), lambda i: (i, 0))]
    flat_params = []
    for (w, b) in padded:
        in_specs.append(pl.BlockSpec(w.shape, lambda i: (0, 0)))   # resident
        in_specs.append(pl.BlockSpec(b.shape, lambda i: (0, 0)))   # resident
        flat_params += [w, b]

    out_spec = pl.BlockSpec((tm_eff, LANE), lambda i: (i, 0))

    # NOTE: on v6e/v7x the matmuls could run in bf16 (f32 accumulation) for
    # ~4x MXU throughput, but that breaks the 1e-5 numerical check and the
    # f32 path is required on v5e anyway, so f32 is kept everywhere.
    out = pl.pallas_call(
        bpnet_kernel,
        out_shape=jax.ShapeDtypeStruct((B_pad, LANE), jnp.float32),
        grid_spec=pltpu.PrefetchScalarGridSpec(
            num_scalar_prefetch=0,
            grid=(grid,),
            in_specs=in_specs,
            out_specs=out_spec,
        ),
        compiler_params=pltpu.CompilerParams(
            dimension_semantics=("parallel",)),
    )(x, *flat_params)

    # Every lane of a row holds the same value; keep column 0 -> (B, 1).
    return out[:B, :1]


# -----------------------------------------------------------------------------
# Deterministic parameter init (PyTorch nn.Linear default: U(-1/sqrt(in), +))
# -----------------------------------------------------------------------------
def init_params(key):
    params = []
    for i in range(len(LAYER_DIMS) - 1):
        fan_in, fan_out = LAYER_DIMS[i], LAYER_DIMS[i + 1]
        key, kw, kb = jax.random.split(key, 3)
        bound = 1.0 / np.sqrt(fan_in)
        w = jax.random.uniform(kw, (fan_in, fan_out), jnp.float32,
                               minval=-bound, maxval=bound)
        b = jax.random.uniform(kb, (1, fan_out), jnp.float32,
                               minval=-bound, maxval=bound)
        params.append((w, b))
    return params


def reference_forward(x, params):
    h = x
    for idx, (w, b) in enumerate(params):
        h = h @ w + b
        h = jnp.tanh(h) if idx < len(params) - 1 else jax.nn.sigmoid(h)
    return h


if __name__ == "__main__":
    key = jax.random.PRNGKey(0)
    key, kx1, kx2 = jax.random.split(key, 3)
    params = init_params(key)

    # Small demo batch: single grid step, whole batch resident in VMEM.
    B = 16
    x = jax.random.normal(kx1, (B, LAYER_DIMS[0]), jnp.float32)
    out = jax.block_until_ready(bpnet_forward(x, params))
    ref = jax.block_until_ready(reference_forward(x, params))
    assert out.shape == (B, 1)
    np.testing.assert_allclose(np.asarray(out), np.asarray(ref),
                               rtol=1e-5, atol=1e-5)

    # Larger ragged batch: exercises the tiled (grid > 1) + batch-padding path.
    B2 = 1000
    x2 = jax.random.normal(kx2, (B2, LAYER_DIMS[0]), jnp.float32)
    out2 = jax.block_until_ready(bpnet_forward(x2, params, tm=512))
    ref2 = jax.block_until_ready(reference_forward(x2, params))
    assert out2.shape == (B2, 1)
    np.testing.assert_allclose(np.asarray(out2), np.asarray(ref2),
                               rtol=1e-5, atol=1e-5)

    print("KERNEL_OK")
</pallas_src>

<mosaic_0001>
module attributes {stable_mosaic.version = 11 : i64} {
  func.func @bpnet_kernel(%arg0: i32, %arg1: memref<16x27xf32, #tpu.memory_space<vmem>>, %arg2: memref<27x128xf32, #tpu.memory_space<vmem>>, %arg3: memref<1x128xf32, #tpu.memory_space<vmem>>, %arg4: memref<128x128xf32, #tpu.memory_space<vmem>>, %arg5: memref<1x128xf32, #tpu.memory_space<vmem>>, %arg6: memref<128x256xf32, #tpu.memory_space<vmem>>, %arg7: memref<1x256xf32, #tpu.memory_space<vmem>>, %arg8: memref<256x128xf32, #tpu.memory_space<vmem>>, %arg9: memref<1x128xf32, #tpu.memory_space<vmem>>, %arg10: memref<128x128xf32, #tpu.memory_space<vmem>>, %arg11: memref<1x128xf32, #tpu.memory_space<vmem>>, %arg12: memref<128x128xf32, #tpu.memory_space<vmem>>, %arg13: memref<1x128xf32, #tpu.memory_space<vmem>>, %arg14: memref<16x128xf32, #tpu.memory_space<vmem>>) attributes {dimension_semantics = [#tpu.dimension_semantics<parallel>], iteration_bounds = array<i64: 1>, scalar_prefetch = 0 : i64, scratch_operands = 0 : i64, tpu.core_type = #tpu.core_type<tc>, window_params = [{transform_indices = @transform_0, window_bounds = array<i64: 16, 27>}, {pipeline_mode = #tpu.pipeline_mode<synchronous>, transform_indices = @transform_1, window_bounds = array<i64: 27, 128>}, {pipeline_mode = #tpu.pipeline_mode<synchronous>, transform_indices = @transform_2, window_bounds = array<i64: 1, 128>}, {pipeline_mode = #tpu.pipeline_mode<synchronous>, transform_indices = @transform_3, window_bounds = array<i64: 128, 128>}, {pipeline_mode = #tpu.pipeline_mode<synchronous>, transform_indices = @transform_4, window_bounds = array<i64: 1, 128>}, {pipeline_mode = #tpu.pipeline_mode<synchronous>, transform_indices = @transform_5, window_bounds = array<i64: 128, 256>}, {pipeline_mode = #tpu.pipeline_mode<synchronous>, transform_indices = @transform_6, window_bounds = array<i64: 1, 256>}, {pipeline_mode = #tpu.pipeline_mode<synchronous>, transform_indices = @transform_7, window_bounds = array<i64: 256, 128>}, {pipeline_mode = #tpu.pipeline_mode<synchronous>, transform_indices = @transform_8, window_bounds = array<i64: 1, 128>}, {pipeline_mode = #tpu.pipeline_mode<synchronous>, transform_indices = @transform_9, window_bounds = array<i64: 128, 128>}, {pipeline_mode = #tpu.pipeline_mode<synchronous>, transform_indices = @transform_10, window_bounds = array<i64: 1, 128>}, {pipeline_mode = #tpu.pipeline_mode<synchronous>, transform_indices = @transform_11, window_bounds = array<i64: 128, 128>}, {pipeline_mode = #tpu.pipeline_mode<synchronous>, transform_indices = @transform_12, window_bounds = array<i64: 1, 128>}, {transform_indices = @transform_13, window_bounds = array<i64: 16, 128>}]} {
    %c0 = arith.constant 0 : index
    %c0_0 = arith.constant 0 : index
    %0 = vector.load %arg1[%c0, %c0_0] : memref<16x27xf32, #tpu.memory_space<vmem>>, vector<16x27xf32>
    %c0_1 = arith.constant 0 : index
    %c0_2 = arith.constant 0 : index
    %1 = vector.load %arg2[%c0_1, %c0_2] : memref<27x128xf32, #tpu.memory_space<vmem>>, vector<27x128xf32>
    %cst = arith.constant dense<0.000000e+00> : vector<16x128xf32>
    %2 = tpu.matmul %0, %1, %cst {dimension_numbers = #tpu.dot_dimension_numbers<[1], [0], [0], [1], [0, 0, 1, 1], [], []>} : vector<16x27xf32>, vector<27x128xf32>, vector<16x128xf32> -> vector<16x128xf32>
    %c0_3 = arith.constant 0 : index
    %c0_4 = arith.constant 0 : index
    %3 = vector.load %arg3[%c0_3, %c0_4] : memref<1x128xf32, #tpu.memory_space<vmem>>, vector<1x128xf32>
    %4 = vector.broadcast %3 : vector<1x128xf32> to vector<16x128xf32>
    %5 = arith.addf %2, %4 : vector<16x128xf32>
    %6 = math.tanh %5 : vector<16x128xf32>
    %c0_5 = arith.constant 0 : index
    %c0_6 = arith.constant 0 : index
    %7 = vector.load %arg4[%c0_5, %c0_6] : memref<128x128xf32, #tpu.memory_space<vmem>>, vector<128x128xf32>
    %cst_7 = arith.constant dense<0.000000e+00> : vector<16x128xf32>
    %8 = tpu.matmul %6, %7, %cst_7 {dimension_numbers = #tpu.dot_dimension_numbers<[1], [0], [0], [1], [0, 0, 1, 1], [], []>} : vector<16x128xf32>, vector<128x128xf32>, vector<16x128xf32> -> vector<16x128xf32>
    %c0_8 = arith.constant 0 : index
    %c0_9 = arith.constant 0 : index
    %9 = vector.load %arg5[%c0_8, %c0_9] : memref<1x128xf32, #tpu.memory_space<vmem>>, vector<1x128xf32>
    %10 = vector.broadcast %9 : vector<1x128xf32> to vector<16x128xf32>
    %11 = arith.addf %8, %10 : vector<16x128xf32>
    %12 = math.tanh %11 : vector<16x128xf32>
    %c0_10 = arith.constant 0 : index
    %c0_11 = arith.constant 0 : index
    %13 = vector.load %arg6[%c0_10, %c0_11] : memref<128x256xf32, #tpu.memory_space<vmem>>, vector<128x256xf32>
    %cst_12 = arith.constant dense<0.000000e+00> : vector<16x256xf32>
    %14 = tpu.matmul %12, %13, %cst_12 {dimension_numbers = #tpu.dot_dimension_numbers<[1], [0], [0], [1], [0, 0, 1, 1], [], []>} : vector<16x128xf32>, vector<128x256xf32>, vector<16x256xf32> -> vector<16x256xf32>
    %c0_13 = arith.constant 0 : index
    %c0_14 = arith.constant 0 : index
    %15 = vector.load %arg7[%c0_13, %c0_14] : memref<1x256xf32, #tpu.memory_space<vmem>>, vector<1x256xf32>
    %16 = vector.broadcast %15 : vector<1x256xf32> to vector<16x256xf32>
    %17 = arith.addf %14, %16 : vector<16x256xf32>
    %18 = math.tanh %17 : vector<16x256xf32>
    %c0_15 = arith.constant 0 : index
    %c0_16 = arith.constant 0 : index
    %19 = vector.load %arg8[%c0_15, %c0_16] : memref<256x128xf32, #tpu.memory_space<vmem>>, vector<256x128xf32>
    %cst_17 = arith.constant dense<0.000000e+00> : vector<16x128xf32>
    %20 = tpu.matmul %18, %19, %cst_17 {dimension_numbers = #tpu.dot_dimension_numbers<[1], [0], [0], [1], [0, 0, 1, 1], [], []>} : vector<16x256xf32>, vector<256x128xf32>, vector<16x128xf32> -> vector<16x128xf32>
    %c0_18 = arith.constant 0 : index
    %c0_19 = arith.constant 0 : index
    %21 = vector.load %arg9[%c0_18, %c0_19] : memref<1x128xf32, #tpu.memory_space<vmem>>, vector<1x128xf32>
    %22 = vector.broadcast %21 : vector<1x128xf32> to vector<16x128xf32>
    %23 = arith.addf %20, %22 : vector<16x128xf32>
    %24 = math.tanh %23 : vector<16x128xf32>
    %c0_20 = arith.constant 0 : index
    %c0_21 = arith.constant 0 : index
    %25 = vector.load %arg10[%c0_20, %c0_21] : memref<128x128xf32, #tpu.memory_space<vmem>>, vector<128x128xf32>
    %cst_22 = arith.constant dense<0.000000e+00> : vector<16x128xf32>
    %26 = tpu.matmul %24, %25, %cst_22 {dimension_numbers = #tpu.dot_dimension_numbers<[1], [0], [0], [1], [0, 0, 1, 1], [], []>} : vector<16x128xf32>, vector<128x128xf32>, vector<16x128xf32> -> vector<16x128xf32>
    %c0_23 = arith.constant 0 : index
    %c0_24 = arith.constant 0 : index
    %27 = vector.load %arg11[%c0_23, %c0_24] : memref<1x128xf32, #tpu.memory_space<vmem>>, vector<1x128xf32>
    %28 = vector.broadcast %27 : vector<1x128xf32> to vector<16x128xf32>
    %29 = arith.addf %26, %28 : vector<16x128xf32>
    %30 = math.tanh %29 : vector<16x128xf32>
    %c0_25 = arith.constant 0 : index
    %c0_26 = arith.constant 0 : index
    %31 = vector.load %arg12[%c0_25, %c0_26] : memref<128x128xf32, #tpu.memory_space<vmem>>, vector<128x128xf32>
    %cst_27 = arith.constant dense<0.000000e+00> : vector<16x128xf32>
    %32 = tpu.matmul %30, %31, %cst_27 {dimension_numbers = #tpu.dot_dimension_numbers<[1], [0], [0], [1], [0, 0, 1, 1], [], []>} : vector<16x128xf32>, vector<128x128xf32>, vector<16x128xf32> -> vector<16x128xf32>
    %c0_28 = arith.constant 0 : index
    %c0_29 = arith.constant 0 : index
    %33 = vector.load %arg13[%c0_28, %c0_29] : memref<1x128xf32, #tpu.memory_space<vmem>>, vector<1x128xf32>
    %34 = vector.broadcast %33 : vector<1x128xf32> to vector<16x128xf32>
    %35 = arith.addf %32, %34 : vector<16x128xf32>
    %36 = arith.negf %35 : vector<16x128xf32>
    %37 = math.exp %36 : vector<16x128xf32>
    %cst_30 = arith.constant 1.000000e+00 : f32
    %38 = vector.broadcast %cst_30 : f32 to vector<16x128xf32>
    %39 = arith.addf %38, %37 : vector<16x128xf32>
    %40 = arith.divf %38, %39 : vector<16x128xf32>
    %c0_31 = arith.constant 0 : index
    %c0_32 = arith.constant 0 : index
    %41 = vector.load %arg14[%c0_31, %c0_32] : memref<16x128xf32, #tpu.memory_space<vmem>>, vector<16x128xf32>
    tpu.vector_store %arg14[%c0_31, %c0_32], %40 {strides = array<i32>} : memref<16x128xf32, #tpu.memory_space<vmem>>, vector<16x128xf32>,
    return
  }
  func.func @transform_0(%arg0: i32) -> (i32, i32) {
    %c0_i32 = arith.constant 0 : i32
    %c0_i32_0 = arith.constant 0 : i32
    return %arg0, %c0_i32 : i32, i32
  }
  func.func @transform_1(%arg0: i32) -> (i32, i32) {
    %c0_i32 = arith.constant 0 : i32
    %c0_i32_0 = arith.constant 0 : i32
    %c0_i32_1 = arith.constant 0 : i32
    return %c0_i32, %c0_i32_0 : i32, i32
  }
  func.func @transform_2(%arg0: i32) -> (i32, i32) {
    %c0_i32 = arith.constant 0 : i32
    %c0_i32_0 = arith.constant 0 : i32
    %c0_i32_1 = arith.constant 0 : i32
    return %c0_i32, %c0_i32_0 : i32, i32
  }
  func.func @transform_3(%arg0: i32) -> (i32, i32) {
    %c0_i32 = arith.constant 0 : i32
    %c0_i32_0 = arith.constant 0 : i32
    %c0_i32_1 = arith.constant 0 : i32
    return %c0_i32, %c0_i32_0 : i32, i32
  }
  func.func @transform_4(%arg0: i32) -> (i32, i32) {
    %c0_i32 = arith.constant 0 : i32
    %c0_i32_0 = arith.constant 0 : i32
    %c0_i32_1 = arith.constant 0 : i32
    return %c0_i32, %c0_i32_0 : i32, i32
  }
  func.func @transform_5(%arg0: i32) -> (i32, i32) {
    %c0_i32 = arith.constant 0 : i32
    %c0_i32_0 = arith.constant 0 : i32
    %c0_i32_1 = arith.constant 0 : i32
    return %c0_i32, %c0_i32_0 : i32, i32
  }
  func.func @transform_6(%arg0: i32) -> (i32, i32) {
    %c0_i32 = arith.constant 0 : i32
    %c0_i32_0 = arith.constant 0 : i32
    %c0_i32_1 = arith.constant 0 : i32
    return %c0_i32, %c0_i32_0 : i32, i32
  }
  func.func @transform_7(%arg0: i32) -> (i32, i32) {
    %c0_i32 = arith.constant 0 : i32
    %c0_i32_0 = arith.constant 0 : i32
    %c0_i32_1 = arith.constant 0 : i32
    return %c0_i32, %c0_i32_0 : i32, i32
  }
  func.func @transform_8(%arg0: i32) -> (i32, i32) {
    %c0_i32 = arith.constant 0 : i32
    %c0_i32_0 = arith.constant 0 : i32
    %c0_i32_1 = arith.constant 0 : i32
    return %c0_i32, %c0_i32_0 : i32, i32
  }
  func.func @transform_9(%arg0: i32) -> (i32, i32) {
    %c0_i32 = arith.constant 0 : i32
    %c0_i32_0 = arith.constant 0 : i32
    %c0_i32_1 = arith.constant 0 : i32
    return %c0_i32, %c0_i32_0 : i32, i32
  }
  func.func @transform_10(%arg0: i32) -> (i32, i32) {
    %c0_i32 = arith.constant 0 : i32
    %c0_i32_0 = arith.constant 0 : i32
    %c0_i32_1 = arith.constant 0 : i32
    return %c0_i32, %c0_i32_0 : i32, i32
  }
  func.func @transform_11(%arg0: i32) -> (i32, i32) {
    %c0_i32 = arith.constant 0 : i32
    %c0_i32_0 = arith.constant 0 : i32
    %c0_i32_1 = arith.constant 0 : i32
    return %c0_i32, %c0_i32_0 : i32, i32
  }
  func.func @transform_12(%arg0: i32) -> (i32, i32) {
    %c0_i32 = arith.constant 0 : i32
    %c0_i32_0 = arith.constant 0 : i32
    %c0_i32_1 = arith.constant 0 : i32
    return %c0_i32, %c0_i32_0 : i32, i32
  }
  func.func @transform_13(%arg0: i32) -> (i32, i32) {
    %c0_i32 = arith.constant 0 : i32
    %c0_i32_0 = arith.constant 0 : i32
    return %arg0, %c0_i32 : i32, i32
  }
}

</mosaic_0001>

<llo_original>
// kernel: tpu_custom_call.1
$region0: #{tpu_custom_call.1}
  #allocation0 [shape = 'u32[]', space=smem, size = 0x4, offset = 0x4, fixed_abs, tag = 'smem constant byte address 0x4 - core index']
  #allocation1 [shape = 'u32[144,128]{1,0:T(1,128)}', space=vmem, size = 0x12000, scoped, tag = 'internal scratch']
  %s0 = inlined_call_operand.hbm [shape: f32[16,27], index: 0, kind: input, shape index: {}]
  %s1 = inlined_call_operand.hbm [shape: f32[27,128], index: 1, kind: input, shape index: {}]
  %s2 = inlined_call_operand.vmem [shape: f32[1,128], index: 2, kind: input, shape index: {}]
  %s3 = inlined_call_operand.hbm [shape: f32[128,128], index: 3, kind: input, shape index: {}]
  %s4 = inlined_call_operand.vmem [shape: f32[1,128], index: 4, kind: input, shape index: {}]
  %s5 = inlined_call_operand.hbm [shape: f32[128,256], index: 5, kind: input, shape index: {}]
  %s6 = inlined_call_operand.vmem [shape: f32[1,256], index: 6, kind: input, shape index: {}]
  %s7 = inlined_call_operand.hbm [shape: f32[256,128], index: 7, kind: input, shape index: {}]
  %s8 = inlined_call_operand.vmem [shape: f32[1,128], index: 8, kind: input, shape index: {}]
  %s9 = inlined_call_operand.hbm [shape: f32[128,128], index: 9, kind: input, shape index: {}]
  %s10 = inlined_call_operand.vmem [shape: f32[1,128], index: 10, kind: input, shape index: {}]
  %s11 = inlined_call_operand.hbm [shape: f32[128,128], index: 11, kind: input, shape index: {}]
  %s12 = inlined_call_operand.vmem [shape: f32[1,128], index: 12, kind: input, shape index: {}]
  %s13 = inlined_call_operand.hbm [shape: f32[16,128], index: 13, kind: output, shape index: {}]
  %s14 = sld [smem:[#allocation0]]
  $region90: #{tpu_custom_call.1} parent=0
    _
  %s16 = ssub.s32 1, %s14
  %s17 = scalar_select 0, %s16, %s14
  $region1: #{tpu_custom_call.1} parent=0
    #allocation2 [shape = 'u8[8192]{0}', space=vmem, size = 0x2000, scoped, tag = 'input window, operand 0, single buffered']
    #allocation3 [shape = 's32[1]{0}', space=sflag, size = 0x4, scoped, tag = 'scoped memory for tpu_custom_call.1']
    #allocation4 [shape = 's32[1]{0}', space=sflag, size = 0x4, scoped, tag = 'scoped memory for tpu_custom_call.1']
    #allocation5 [shape = 'u8[16384]{0}', space=vmem, size = 0x4000, scoped, tag = 'input window, operand 1, single buffered']
    #allocation6 [shape = 's32[1]{0}', space=sflag, size = 0x4, scoped, tag = 'scoped memory for tpu_custom_call.1']
    #allocation7 [shape = 'u8[65536]{0}', space=vmem, size = 0x10000, scoped, tag = 'input window, operand 3, single buffered']
    #allocation8 [shape = 'u8[131072]{0}', space=vmem, size = 0x20000, scoped, tag = 'input window, operand 5, single buffered']
    #allocation9 [shape = 's32[1]{0}', space=sflag, size = 0x4, scoped, tag = 'scoped memory for tpu_custom_call.1']
    #allocation10 [shape = 'u8[131072]{0}', space=vmem, size = 0x20000, scoped, tag = 'input window, operand 7, single buffered']
    #allocation11 [shape = 'u8[65536]{0}', space=vmem, size = 0x10000, scoped, tag = 'input window, operand 9, single buffered']
    #allocation12 [shape = 's32[1]{0}', space=sflag, size = 0x4, scoped, tag = 'scoped memory for tpu_custom_call.1']
    #allocation13 [shape = 'u8[65536]{0}', space=vmem, size = 0x10000, scoped, tag = 'input window, operand 11, single buffered']
    #allocation14 [shape = 'u8[8192]{0}', space=vmem, size = 0x2000, scoped, tag = 'output window, operand 0, single buffered']
    %18 = vsyncpa [#allocation3], 0
    %19 = vsyncpa [#allocation6], 0
    %20 = vsyncpa [#allocation9], 0
    %21 = vsyncpa [#allocation12], 0
    %22 = vsyncpa [#allocation4], 0
    // Predicated region
    $region2: #{tpu_custom_call.1} parent=1 // pred_check
      _
    $region3: #{tpu_custom_call.1} parent=1 // pred_check_branch
      %24 = sbr.rel (0) target = $region5
    $region4: #{tpu_custom_call.1} parent=1 // pred_region
      %s26 = ssub.s32 256, 256
      %27 = vsyncadd [#allocation3], %s26
      %s28 = sshll.u32 [#allocation2], 4
      %s29 = int_to_ptr.vmem [resolvable:$true] %s28
      %34 = dma.hbm_to_vmem [thread:$0]  %s0, 256, %s29, [#allocation3], 128, 128, 8
    $region5: #{tpu_custom_call.1} parent=1 // pred_fallthru
      _
    // Predicated region
    $region6: #{tpu_custom_call.1} parent=1 // pred_check
      _
    $region7: #{tpu_custom_call.1} parent=1 // pred_check_branch
      %36 = sbr.rel (0) target = $region9
    $region8: #{tpu_custom_call.1} parent=1 // pred_region
      %s38 = ssub.s32 512, 512
      %39 = vsyncadd [#allocation6], %s38
      %s40 = sshll.u32 [#allocation5], 4
      %s41 = int_to_ptr.vmem [resolvable:$true] %s40
      %46 = dma.hbm_to_vmem [thread:$0]  %s1, 512, %s41, [#allocation6], 128, 128, 8
    $region9: #{tpu_custom_call.1} parent=1 // pred_fallthru
      _
    // Predicated region
    $region10: #{tpu_custom_call.1} parent=1 // pred_check
      _
    $region11: #{tpu_custom_call.1} parent=1 // pred_check_branch
      %48 = sbr.rel (0) target = $region13
    $region12: #{tpu_custom_call.1} parent=1 // pred_region
      _
    $region13: #{tpu_custom_call.1} parent=1 // pred_fallthru
      _
    // Predicated region
    $region14: #{tpu_custom_call.1} parent=1 // pred_check
      _
    $region15: #{tpu_custom_call.1} parent=1 // pred_check_branch
      %50 = sbr.rel (0) target = $region17
    $region16: #{tpu_custom_call.1} parent=1 // pred_region
      %s52 = ssub.s32 2048, 2048
      %53 = vsyncadd [#allocation6], %s52
      %s54 = sshll.u32 [#allocation7], 4
      %s55 = int_to_ptr.vmem [resolvable:$true] %s54
      %60 = dma.hbm_to_vmem [thread:$0]  %s3, 2048, %s55, [#allocation6], 128, 128, 8
    $region17: #{tpu_custom_call.1} parent=1 // pred_fallthru
      _
    // Predicated region
    $region18: #{tpu_custom_call.1} parent=1 // pred_check
      _
    $region19: #{tpu_custom_call.1} parent=1 // pred_check_branch
      %62 = sbr.rel (0) target = $region21
    $region20: #{tpu_custom_call.1} parent=1 // pred_region
      _
    $region21: #{tpu_custom_call.1} parent=1 // pred_fallthru
      _
    // Predicated region
    $region22: #{tpu_custom_call.1} parent=1 // pred_check
      _
    $region23: #{tpu_custom_call.1} parent=1 // pred_check_branch
      %64 = sbr.rel (0) target = $region25
    $region24: #{tpu_custom_call.1} parent=1 // pred_region
      %s66 = ssub.s32 4096, 4096
      %67 = vsyncadd [#allocation9], %s66
      %s68 = sshll.u32 [#allocation8], 4
      %s69 = int_to_ptr.vmem [resolvable:$true] %s68
      %74 = dma.hbm_to_vmem [thread:$0]  %s5, 4096, %s69, [#allocation9], 256, 256, 16
    $region25: #{tpu_custom_call.1} parent=1 // pred_fallthru
      _
    // Predicated region
    $region26: #{tpu_custom_call.1} parent=1 // pred_check
      _
    $region27: #{tpu_custom_call.1} parent=1 // pred_check_branch
      %76 = sbr.rel (0) target = $region29
    $region28: #{tpu_custom_call.1} parent=1 // pred_region
      _
    $region29: #{tpu_custom_call.1} parent=1 // pred_fallthru
      _
    // Predicated region
    $region30: #{tpu_custom_call.1} parent=1 // pred_check
      _
    $region31: #{tpu_custom_call.1} parent=1 // pred_check_branch
      %78 = sbr.rel (0) target = $region33
    $region32: #{tpu_custom_call.1} parent=1 // pred_region
      %s80 = ssub.s32 4096, 4096
      %81 = vsyncadd [#allocation9], %s80
      %s82 = sshll.u32 [#allocation10], 4
      %s83 = int_to_ptr.vmem [resolvable:$true] %s82
      %88 = dma.hbm_to_vmem [thread:$0]  %s7, 4096, %s83, [#allocation9], 128, 128, 8
    $region33: #{tpu_custom_call.1} parent=1 // pred_fallthru
      _
    // Predicated region
    $region34: #{tpu_custom_call.1} parent=1 // pred_check
      _
    $region35: #{tpu_custom_call.1} parent=1 // pred_check_branch
      %90 = sbr.rel (0) target = $region37
    $region36: #{tpu_custom_call.1} parent=1 // pred_region
      _
    $region37: #{tpu_custom_call.1} parent=1 // pred_fallthru
      _
    // Predicated region
    $region38: #{tpu_custom_call.1} parent=1 // pred_check
      _
    $region39: #{tpu_custom_call.1} parent=1 // pred_check_branch
      %92 = sbr.rel (0) target = $region41
    $region40: #{tpu_custom_call.1} parent=1 // pred_region
      %s94 = ssub.s32 2048, 2048
      %95 = vsyncadd [#allocation12], %s94
      %s96 = sshll.u32 [#allocation11], 4
      %s97 = int_to_ptr.vmem [resolvable:$true] %s96
      %102 = dma.hbm_to_vmem [thread:$0]  %s9, 2048, %s97, [#allocation12], 128, 128, 8
    $region41: #{tpu_custom_call.1} parent=1 // pred_fallthru
      _
    // Predicated region
    $region42: #{tpu_custom_call.1} parent=1 // pred_check
      _
    $region43: #{tpu_custom_call.1} parent=1 // pred_check_branch
      %104 = sbr.rel (0) target = $region45
    $region44: #{tpu_custom_call.1} parent=1 // pred_region
      _
    $region45: #{tpu_custom_call.1} parent=1 // pred_fallthru
      _
    // Predicated region
    $region46: #{tpu_custom_call.1} parent=1 // pred_check
      _
    $region47: #{tpu_custom_call.1} parent=1 // pred_check_branch
      %106 = sbr.rel (0) target = $region49
    $region48: #{tpu_custom_call.1} parent=1 // pred_region
      %s108 = ssub.s32 2048, 2048
      %109 = vsyncadd [#allocation12], %s108
      %s110 = sshll.u32 [#allocation13], 4
      %s111 = int_to_ptr.vmem [resolvable:$true] %s110
      %116 = dma.hbm_to_vmem [thread:$0]  %s11, 2048, %s111, [#allocation12], 128, 128, 8
    $region49: #{tpu_custom_call.1} parent=1 // pred_fallthru
      _
    // Predicated region
    $region50: #{tpu_custom_call.1} parent=1 // pred_check
      _
    $region51: #{tpu_custom_call.1} parent=1 // pred_check_branch
      %118 = sbr.rel (0) target = $region53
    $region52: #{tpu_custom_call.1} parent=1 // pred_region
      _
    $region53: #{tpu_custom_call.1} parent=1 // pred_fallthru
      _
    // Predicated region
    $region54: #{tpu_custom_call.1} parent=1 // pred_check
      _
    $region55: #{tpu_custom_call.1} parent=1 // pred_check_branch
      %120 = sbr.rel (0) target = $region57
    $region56: #{tpu_custom_call.1} parent=1 // pred_region
      %121 = dma.done [#allocation3], 256
    $region57: #{tpu_custom_call.1} parent=1 // pred_fallthru
      _
    // Predicated region
    $region58: #{tpu_custom_call.1} parent=1 // pred_check
      _
    $region59: #{tpu_custom_call.1} parent=1 // pred_check_branch
      %123 = sbr.rel (0) target = $region61
    $region60: #{tpu_custom_call.1} parent=1 // pred_region
      %124 = dma.done [#allocation6], 512
    $region61: #{tpu_custom_call.1} parent=1 // pred_fallthru
      _
    // Predicated region
    $region62: #{tpu_custom_call.1} parent=1 // pred_check
      _
    $region63: #{tpu_custom_call.1} parent=1 // pred_check_branch
      %126 = sbr.rel (0) target = $region65
    $region64: #{tpu_custom_call.1} parent=1 // pred_region
      %127 = dma.done [#allocation6], 2048
    $region65: #{tpu_custom_call.1} parent=1 // pred_fallthru
      _
    // Predicated region
    $region66: #{tpu_custom_call.1} parent=1 // pred_check
      _
    $region67: #{tpu_custom_call.1} parent=1 // pred_check_branch
      %129 = sbr.rel (0) target = $region69
    $region68: #{tpu_custom_call.1} parent=1 // pred_region
      %130 = dma.done [#allocation9], 4096
    $region69: #{tpu_custom_call.1} parent=1 // pred_fallthru
      _
    // Predicated region
    $region70: #{tpu_custom_call.1} parent=1 // pred_check
      _
    $region71: #{tpu_custom_call.1} parent=1 // pred_check_branch
      %132 = sbr.rel (0) target = $region73
    $region72: #{tpu_custom_call.1} parent=1 // pred_region
      %133 = dma.done [#allocation9], 4096
    $region73: #{tpu_custom_call.1} parent=1 // pred_fallthru
      _
    // Predicated region
    $region74: #{tpu_custom_call.1} parent=1 // pred_check
      _
    $region75: #{tpu_custom_call.1} parent=1 // pred_check_branch
      %135 = sbr.rel (0) target = $region77
    $region76: #{tpu_custom_call.1} parent=1 // pred_region
      %136 = dma.done [#allocation12], 2048
    $region77: #{tpu_custom_call.1} parent=1 // pred_fallthru
      _
    // Predicated region
    $region78: #{tpu_custom_call.1} parent=1 // pred_check
      _
    $region79: #{tpu_custom_call.1} parent=1 // pred_check_branch
      %138 = sbr.rel (0) target = $region81
    $region80: #{tpu_custom_call.1} parent=1 // pred_region
      %139 = dma.done [#allocation12], 2048
    $region81: #{tpu_custom_call.1} parent=1 // pred_fallthru
      _
    %v140 = vld [vmem:[#allocation2] sm:$0xff]
    %v141 = vld [vmem:[#allocation2 + $0x8] sm:$0xff]
    %v142 = vld [vmem:[#allocation5] sm:$0xff]
    %v143 = vld [vmem:[#allocation5 + $0x8] sm:$0xff]
    %v144 = vld [vmem:[#allocation5 + $0x10] sm:$0xff]
    %v145 = vld [vmem:[#allocation5 + $0x18] sm:$0x7]
    %v146 = vld [vmem:[%s2] sm:$0x1]
    %v148 = vlaneseq
    %v149 = vshrl.u32 %v148, 7
    %v150 = vsub.s32 0, %v149
    %v151 = vrot.slane %v146, %v150
    %vm153 = vcmask 220160
    %v155 = vsel %vm153, %v140, 0
    %v158 = vsel %vm153, %v141, 0
    %vm160 = vcmask 1042432
    %v162 = vsel %vm160, %v145, 0
    %164 = vmatprep.subr.mxu0 0.0
    %165 = vmatpush1.msra.mxu0 %v142
    %166 = vmatprep.subr.mxu0 0.0
    %167 = vmatpush1.msra.mxu0 %v143
    %168 = vmatprep.subr.mxu0 0.0
    %169 = vmatpush1.msra.mxu0 %v144
    %170 = vmatprep.subr.mxu0 0.0
    %171 = vmatpush1.msra.mxu0 %v162
    %172 = vmatprep.subr.mxu0 0.0
    %173 = vmatpush1.msra.mxu0 0.0
    %174 = vmatprep.subr.mxu0 0.0
    %175 = vmatpush1.msra.mxu0 0.0
    %176 = vmatprep.subr.mxu0 0.0
    %177 = vmatpush1.msra.mxu0 0.0
    %178 = vmatprep.subr.mxu0 0.0
    %179 = vmatpush1.msra.mxu0 0.0
    %180 = vmatprep.subr.mxu0 0.0
    %181 = vmatpush1.msra.mxu0 0.0
    %182 = vmatprep.subr.mxu0 0.0
    %183 = vmatpush1.msra.mxu0 0.0
    %184 = vmatprep.subr.mxu0 0.0
    %185 = vmatpush1.msra.mxu0 0.0
    %186 = vmatprep.subr.mxu0 0.0
    %187 = vmatpush1.msra.mxu0 0.0
    %188 = vmatprep.subr.mxu0 0.0
    %189 = vmatpush1.msra.mxu0 0.0
    %190 = vmatprep.subr.mxu0 0.0
    %191 = vmatpush1.msra.mxu0 0.0
    %192 = vmatprep.subr.mxu0 0.0
    %193 = vmatpush1.msra.mxu0 0.0
    %194 = vmatprep.subr.mxu0 0.0
    %195 = vmatpush1.msra.mxu0 0.0
    %196 = vmatprep.subr.mxu0 0.0
    %197 = vmatpush1.msra.mxu0 0.0
    %198 = vmatprep.subr.mxu0 0.0
    %199 = vmatpush1.msra.mxu0 0.0
    %200 = vmatprep.subr.mxu0 0.0
    %201 = vmatpush1.msra.mxu0 0.0
    %202 = vmatprep.subr.mxu0 0.0
    %203 = vmatpush1.msra.mxu0 0.0
    %204 = vmatprep.subr.mxu0 0.0
    %205 = vmatpush1.msra.mxu0 0.0
    %206 = vmatprep.subr.mxu0 0.0
    %207 = vmatpush1.msra.mxu0 0.0
    %208 = vmatprep.subr.mxu0 0.0
    %209 = vmatpush1.msra.mxu0 0.0
    %210 = vmatprep.subr.mxu0 0.0
    %211 = vmatpush1.msra.mxu0 0.0
    %212 = vmatprep.subr.mxu0 0.0
    %213 = vmatpush1.msra.mxu0 0.0
    %214 = vmatprep.subr.mxu0 0.0
    %215 = vmatpush1.msra.mxu0 0.0
    %216 = vmatprep.subr.mxu0 0.0
    %217 = vmatpush1.msra.mxu0 0.0
    %218 = vmatprep.subr.mxu0 0.0
    %219 = vmatpush1.msra.mxu0 0.0
    %220 = vmatprep.subr.mxu0 0.0
    %221 = vmatpush1.msra.mxu0 0.0
    %222 = vmatprep.subr.mxu0 0.0
    %223 = vmatpush1.msra.mxu0 0.0
    %224 = vmatprep.subr.mxu0 0.0
    %225 = vmatpush1.msra.mxu0 0.0
    %226 = vmatprep.subr.mxu0 0.0
    %227 = vmatpush1.msra.mxu0 0.0
    %228 = vmatprep.mubr.f32.mxu0 0.0
    %229 = vmatmul.mubr.f32.gmra.mrb[0].mxu0 %v155
    %v230 = vpop.f32.mrb[0].mxu0
    %v231 = vadd.f32 %v151, %v230
    %v232 = vpop.f32.mrb[0].mxu0
    %233 = vmatprep.mubr.f32.mxu0 0.0
    %234 = vmatmul.mubr.f32.gmra.mrb[0].mxu0 %v158
    %v235 = vpop.f32.mrb[0].mxu0
    %v236 = vadd.f32 %v151, %v235
    %v237 = vpop.f32.mrb[0].mxu0
    %238 = vdwg.mxu0
    %v239 = vtanh.pop %v231
    %v240 = vtanh.pop %v236
    %v241 = vld [vmem:[#allocation7] sm:$0xff]
    %v242 = vld [vmem:[#allocation7 + $0x8] sm:$0xff]
    %v243 = vld [vmem:[#allocation7 + $0x10] sm:$0xff]
    %v244 = vld [vmem:[#allocation7 + $0x18] sm:$0xff]
    %v245 = vld [vmem:[#allocation7 + $0x20] sm:$0xff]
    %v246 = vld [vmem:[#allocation7 + $0x28] sm:$0xff]
    %v247 = vld [vmem:[#allocation7 + $0x30] sm:$0xff]
    %v248 = vld [vmem:[#allocation7 + $0x38] sm:$0xff]
    %v249 = vld [vmem:[#allocation7 + $0x40] sm:$0xff]
    %v250 = vld [vmem:[#allocation7 + $0x48] sm:$0xff]
    %v251 = vld [vmem:[#allocation7 + $0x50] sm:$0xff]
    %v252 = vld [vmem:[#allocation7 + $0x58] sm:$0xff]
    %v253 = vld [vmem:[#allocation7 + $0x60] sm:$0xff]
    %v254 = vld [vmem:[#allocation7 + $0x68] sm:$0xff]
    %v255 = vld [vmem:[#allocation7 + $0x70] sm:$0xff]
    %v256 = vld [vmem:[#allocation7 + $0x78] sm:$0xff]
    %v257 = vld [vmem:[%s4] sm:$0x1]
    %v259 = vlaneseq
    %v260 = vshrl.u32 %v259, 7
    %v261 = vsub.s32 0, %v260
    %v262 = vrot.slane %v257, %v261
    %264 = vmatprep.subr.mxu0 0.0
    %265 = vmatpush1.msra.mxu0 %v241
    %266 = vmatprep.subr.mxu0 0.0
    %267 = vmatpush1.msra.mxu0 %v242
    %268 = vmatprep.subr.mxu0 0.0
    %269 = vmatpush1.msra.mxu0 %v243
    %270 = vmatprep.subr.mxu0 0.0
    %271 = vmatpush1.msra.mxu0 %v244
    %272 = vmatprep.subr.mxu0 0.0
    %273 = vmatpush1.msra.mxu0 %v245
    %274 = vmatprep.subr.mxu0 0.0
    %275 = vmatpush1.msra.mxu0 %v246
    %276 = vmatprep.subr.mxu0 0.0
    %277 = vmatpush1.msra.mxu0 %v247
    %278 = vmatprep.subr.mxu0 0.0
    %279 = vmatpush1.msra.mxu0 %v248
    %280 = vmatprep.subr.mxu0 0.0
    %281 = vmatpush1.msra.mxu0 %v249
    %282 = vmatprep.subr.mxu0 0.0
    %283 = vmatpush1.msra.mxu0 %v250
    %284 = vmatprep.subr.mxu0 0.0
    %285 = vmatpush1.msra.mxu0 %v251
    %286 = vmatprep.subr.mxu0 0.0
    %287 = vmatpush1.msra.mxu0 %v252
    %288 = vmatprep.subr.mxu0 0.0
    %289 = vmatpush1.msra.mxu0 %v253
    %290 = vmatprep.subr.mxu0 0.0
    %291 = vmatpush1.msra.mxu0 %v254
    %292 = vmatprep.subr.mxu0 0.0
    %293 = vmatpush1.msra.mxu0 %v255
    %294 = vmatprep.subr.mxu0 0.0
    %295 = vmatpush1.msra.mxu0 %v256
    %296 = vmatprep.subr.mxu0 0.0
    %297 = vmatpush1.msra.mxu0 0.0
    %298 = vmatprep.subr.mxu0 0.0
    %299 = vmatpush1.msra.mxu0 0.0
    %300 = vmatprep.subr.mxu0 0.0
    %301 = vmatpush1.msra.mxu0 0.0
    %302 = vmatprep.subr.mxu0 0.0
    %303 = vmatpush1.msra.mxu0 0.0
    %304 = vmatprep.subr.mxu0 0.0
    %305 = vmatpush1.msra.mxu0 0.0
    %306 = vmatprep.subr.mxu0 0.0
    %307 = vmatpush1.msra.mxu0 0.0
    %308 = vmatprep.subr.mxu0 0.0
    %309 = vmatpush1.msra.mxu0 0.0
    %310 = vmatprep.subr.mxu0 0.0
    %311 = vmatpush1.msra.mxu0 0.0
    %312 = vmatprep.subr.mxu0 0.0
    %313 = vmatpush1.msra.mxu0 0.0
    %314 = vmatprep.subr.mxu0 0.0
    %315 = vmatpush1.msra.mxu0 0.0
    %316 = vmatprep.subr.mxu0 0.0
    %317 = vmatpush1.msra.mxu0 0.0
    %318 = vmatprep.subr.mxu0 0.0
    %319 = vmatpush1.msra.mxu0 0.0
    %320 = vmatprep.subr.mxu0 0.0
    %321 = vmatpush1.msra.mxu0 0.0
    %322 = vmatprep.subr.mxu0 0.0
    %323 = vmatpush1.msra.mxu0 0.0
    %324 = vmatprep.subr.mxu0 0.0
    %325 = vmatpush1.msra.mxu0 0.0
    %326 = vmatprep.subr.mxu0 0.0
    %327 = vmatpush1.msra.mxu0 0.0
    %328 = vmatprep.mubr.f32.mxu0 0.0
    %329 = vmatmul.mubr.f32.gmra.mrb[0].mxu0 %v239
    %v330 = vpop.f32.mrb[0].mxu0
    %v331 = vadd.f32 %v262, %v330
    %v332 = vpop.f32.mrb[0].mxu0
    %333 = vmatprep.mubr.f32.mxu0 0.0
    %334 = vmatmul.mubr.f32.gmra.mrb[0].mxu0 %v240
    %v335 = vpop.f32.mrb[0].mxu0
    %v336 = vadd.f32 %v262, %v335
    %v337 = vpop.f32.mrb[0].mxu0
    %338 = vdwg.mxu0
    %v339 = vtanh.pop %v331
    %v340 = vtanh.pop %v336
    %v341 = vld [vmem:[#allocation8] sm:$0xff]
    %v342 = vld [vmem:[#allocation8 + $0x8] sm:$0xff]
    %v343 = vld [vmem:[#allocation8 + $0x10] sm:$0xff]
    %v344 = vld [vmem:[#allocation8 + $0x18] sm:$0xff]
    %v345 = vld [vmem:[#allocation8 + $0x20] sm:$0xff]
    %v346 = vld [vmem:[#allocation8 + $0x28] sm:$0xff]
    %v347 = vld [vmem:[#allocation8 + $0x30] sm:$0xff]
    %v348 = vld [vmem:[#allocation8 + $0x38] sm:$0xff]
    %v349 = vld [vmem:[#allocation8 + $0x40] sm:$0xff]
    %v350 = vld [vmem:[#allocation8 + $0x48] sm:$0xff]
    %v351 = vld [vmem:[#allocation8 + $0x50] sm:$0xff]
    %v352 = vld [vmem:[#allocation8 + $0x58] sm:$0xff]
    %v353 = vld [vmem:[#allocation8 + $0x60] sm:$0xff]
    %v354 = vld [vmem:[#allocation8 + $0x68] sm:$0xff]
    %v355 = vld [vmem:[#allocation8 + $0x70] sm:$0xff]
    %v356 = vld [vmem:[#allocation8 + $0x78] sm:$0xff]
    %v357 = vld [vmem:[#allocation8 + $0x80] sm:$0xff]
    %v358 = vld [vmem:[#allocation8 + $0x88] sm:$0xff]
    %v359 = vld [vmem:[#allocation8 + $0x90] sm:$0xff]
    %v360 = vld [vmem:[#allocation8 + $0x98] sm:$0xff]
    %v361 = vld [vmem:[#allocation8 + $0xa0] sm:$0xff]
    %v362 = vld [vmem:[#allocation8 + $0xa8] sm:$0xff]
    %v363 = vld [vmem:[#allocation8 + $0xb0] sm:$0xff]
    %v364 = vld [vmem:[#allocation8 + $0xb8] sm:$0xff]
    %v365 = vld [vmem:[#allocation8 + $0xc0] sm:$0xff]
    %v366 = vld [vmem:[#allocation8 + $0xc8] sm:$0xff]
    %v367 = vld [vmem:[#allocation8 + $0xd0] sm:$0xff]
    %v368 = vld [vmem:[#allocation8 + $0xd8] sm:$0xff]
    %v369 = vld [vmem:[#allocation8 + $0xe0] sm:$0xff]
    %v370 = vld [vmem:[#allocation8 + $0xe8] sm:$0xff]
    %v371 = vld [vmem:[#allocation8 + $0xf0] sm:$0xff]
    %v372 = vld [vmem:[#allocation8 + $0xf8] sm:$0xff]
    %v373 = vld [vmem:[%s6] sm:$0x3]
    %v375 = vlaneseq
    %v376 = vshrl.u32 %v375, 7
    %v377 = vsub.s32 0, %v376
    %v378 = vrot.slane %v373, %v377
    %v379 = vlaneseq
    %v380 = vshrl.u32 %v379, 7
    %v381 = vsub.s32 1, %v380
    %v382 = vrot.slane %v373, %v381
    %385 = vmatprep.subr.mxu0 %v342
    %386 = vmatpush1.msra.mxu0 %v341
    %387 = vmatprep.subr.mxu0 %v344
    %388 = vmatpush1.msra.mxu0 %v343
    %389 = vmatprep.subr.mxu0 %v346
    %390 = vmatpush1.msra.mxu0 %v345
    %391 = vmatprep.subr.mxu0 %v348
    %392 = vmatpush1.msra.mxu0 %v347
    %393 = vmatprep.subr.mxu0 %v350
    %394 = vmatpush1.msra.mxu0 %v349
    %395 = vmatprep.subr.mxu0 %v352
    %396 = vmatpush1.msra.mxu0 %v351
    %397 = vmatprep.subr.mxu0 %v354
    %398 = vmatpush1.msra.mxu0 %v353
    %399 = vmatprep.subr.mxu0 %v356
    %400 = vmatpush1.msra.mxu0 %v355
    %401 = vmatprep.subr.mxu0 %v358
    %402 = vmatpush1.msra.mxu0 %v357
    %403 = vmatprep.subr.mxu0 %v360
    %404 = vmatpush1.msra.mxu0 %v359
    %405 = vmatprep.subr.mxu0 %v362
    %406 = vmatpush1.msra.mxu0 %v361
    %407 = vmatprep.subr.mxu0 %v364
    %408 = vmatpush1.msra.mxu0 %v363
    %409 = vmatprep.subr.mxu0 %v366
    %410 = vmatpush1.msra.mxu0 %v365
    %411 = vmatprep.subr.mxu0 %v368
    %412 = vmatpush1.msra.mxu0 %v367
    %413 = vmatprep.subr.mxu0 %v370
    %414 = vmatpush1.msra.mxu0 %v369
    %415 = vmatprep.subr.mxu0 %v372
    %416 = vmatpush1.msra.mxu0 %v371
    %417 = vmatprep.subr.mxu0 0.0
    %418 = vmatpush1.msra.mxu0 0.0
    %419 = vmatprep.subr.mxu0 0.0
    %420 = vmatpush1.msra.mxu0 0.0
    %421 = vmatprep.subr.mxu0 0.0
    %422 = vmatpush1.msra.mxu0 0.0
    %423 = vmatprep.subr.mxu0 0.0
    %424 = vmatpush1.msra.mxu0 0.0
    %425 = vmatprep.subr.mxu0 0.0
    %426 = vmatpush1.msra.mxu0 0.0
    %427 = vmatprep.subr.mxu0 0.0
    %428 = vmatpush1.msra.mxu0 0.0
    %429 = vmatprep.subr.mxu0 0.0
    %430 = vmatpush1.msra.mxu0 0.0
    %431 = vmatprep.subr.mxu0 0.0
    %432 = vmatpush1.msra.mxu0 0.0
    %433 = vmatprep.subr.mxu0 0.0
    %434 = vmatpush1.msra.mxu0 0.0
    %435 = vmatprep.subr.mxu0 0.0
    %436 = vmatpush1.msra.mxu0 0.0
    %437 = vmatprep.subr.mxu0 0.0
    %438 = vmatpush1.msra.mxu0 0.0
    %439 = vmatprep.subr.mxu0 0.0
    %440 = vmatpush1.msra.mxu0 0.0
    %441 = vmatprep.subr.mxu0 0.0
    %442 = vmatpush1.msra.mxu0 0.0
    %443 = vmatprep.subr.mxu0 0.0
    %444 = vmatpush1.msra.mxu0 0.0
    %445 = vmatprep.subr.mxu0 0.0
    %446 = vmatpush1.msra.mxu0 0.0
    %447 = vmatprep.subr.mxu0 0.0
    %448 = vmatpush1.msra.mxu0 0.0
    %449 = vmatprep.mubr.f32.mxu0 0.0
    %450 = vmatmul.mubr.f32.gmra.mrb[0].mxu0 %v339
    %v451 = vpop.f32.mrb[0].mxu0
    %v452 = vadd.f32 %v378, %v451
    %v453 = vpop.f32.mrb[0].mxu0
    %v454 = vadd.f32 %v382, %v453
    %455 = vmatprep.mubr.f32.mxu0 0.0
    %456 = vmatmul.mubr.f32.gmra.mrb[0].mxu0 %v340
    %v457 = vpop.f32.mrb[0].mxu0
    %v458 = vadd.f32 %v378, %v457
    %v459 = vpop.f32.mrb[0].mxu0
    %v460 = vadd.f32 %v382, %v459
    %461 = vdwg.mxu0
    %v462 = vtanh.pop %v452
    %v463 = vtanh.pop %v454
    %v464 = vtanh.pop %v458
    %v465 = vtanh.pop %v460
    %v466 = vld [vmem:[#allocation10] sm:$0xff]
    %v467 = vld [vmem:[#allocation10 + $0x8] sm:$0xff]
    %v468 = vld [vmem:[#allocation10 + $0x10] sm:$0xff]
    %v469 = vld [vmem:[#allocation10 + $0x18] sm:$0xff]
    %v470 = vld [vmem:[#allocation10 + $0x20] sm:$0xff]
    %v471 = vld [vmem:[#allocation10 + $0x28] sm:$0xff]
    %v472 = vld [vmem:[#allocation10 + $0x30] sm:$0xff]
    %v473 = vld [vmem:[#allocation10 + $0x38] sm:$0xff]
    %v474 = vld [vmem:[#allocation10 + $0x40] sm:$0xff]
    %v475 = vld [vmem:[#allocation10 + $0x48] sm:$0xff]
    %v476 = vld [vmem:[#allocation10 + $0x50] sm:$0xff]
    %v477 = vld [vmem:[#allocation10 + $0x58] sm:$0xff]
    %v478 = vld [vmem:[#allocation10 + $0x60] sm:$0xff]
    %v479 = vld [vmem:[#allocation10 + $0x68] sm:$0xff]
    %v480 = vld [vmem:[#allocation10 + $0x70] sm:$0xff]
    %v481 = vld [vmem:[#allocation10 + $0x78] sm:$0xff]
    %v482 = vld [vmem:[#allocation10 + $0x80] sm:$0xff]
    %v483 = vld [vmem:[#allocation10 + $0x88] sm:$0xff]
    %v484 = vld [vmem:[#allocation10 + $0x90] sm:$0xff]
    %v485 = vld [vmem:[#allocation10 + $0x98] sm:$0xff]
    %v486 = vld [vmem:[#allocation10 + $0xa0] sm:$0xff]
    %v487 = vld [vmem:[#allocation10 + $0xa8] sm:$0xff]
    %v488 = vld [vmem:[#allocation10 + $0xb0] sm:$0xff]
    %v489 = vld [vmem:[#allocation10 + $0xb8] sm:$0xff]
    %v490 = vld [vmem:[#allocation10 + $0xc0] sm:$0xff]
    %v491 = vld [vmem:[#allocation10 + $0xc8] sm:$0xff]
    %v492 = vld [vmem:[#allocation10 + $0xd0] sm:$0xff]
    %v493 = vld [vmem:[#allocation10 + $0xd8] sm:$0xff]
    %v494 = vld [vmem:[#allocation10 + $0xe0] sm:$0xff]
    %v495 = vld [vmem:[#allocation10 + $0xe8] sm:$0xff]
    %v496 = vld [vmem:[#allocation10 + $0xf0] sm:$0xff]
    %v497 = vld [vmem:[#allocation10 + $0xf8] sm:$0xff]
    %v498 = vld [vmem:[%s8] sm:$0x1]
    %v500 = vlaneseq
    %v501 = vshrl.u32 %v500, 7
    %v502 = vsub.s32 0, %v501
    %v503 = vrot.slane %v498, %v502
    %505 = vmatprep.subr.mxu0 0.0
    %506 = vmatpush1.msra.mxu0 %v466
    %507 = vmatprep.subr.mxu0 0.0
    %508 = vmatpush1.msra.mxu0 %v467
    %509 = vmatprep.subr.mxu0 0.0
    %510 = vmatpush1.msra.mxu0 %v468
    %511 = vmatprep.subr.mxu0 0.0
    %512 = vmatpush1.msra.mxu0 %v469
    %513 = vmatprep.subr.mxu0 0.0
    %514 = vmatpush1.msra.mxu0 %v470
    %515 = vmatprep.subr.mxu0 0.0
    %516 = vmatpush1.msra.mxu0 %v471
    %517 = vmatprep.subr.mxu0 0.0
    %518 = vmatpush1.msra.mxu0 %v472
    %519 = vmatprep.subr.mxu0 0.0
    %520 = vmatpush1.msra.mxu0 %v473
    %521 = vmatprep.subr.mxu0 0.0
    %522 = vmatpush1.msra.mxu0 %v474
    %523 = vmatprep.subr.mxu0 0.0
    %524 = vmatpush1.msra.mxu0 %v475
    %525 = vmatprep.subr.mxu0 0.0
    %526 = vmatpush1.msra.mxu0 %v476
    %527 = vmatprep.subr.mxu0 0.0
    %528 = vmatpush1.msra.mxu0 %v477
    %529 = vmatprep.subr.mxu0 0.0
    %530 = vmatpush1.msra.mxu0 %v478
    %531 = vmatprep.subr.mxu0 0.0
    %532 = vmatpush1.msra.mxu0 %v479
    %533 = vmatprep.subr.mxu0 0.0
    %534 = vmatpush1.msra.mxu0 %v480
    %535 = vmatprep.subr.mxu0 0.0
    %536 = vmatpush1.msra.mxu0 %v481
    %537 = vmatprep.subr.mxu0 0.0
    %538 = vmatpush1.msra.mxu0 %v482
    %539 = vmatprep.subr.mxu0 0.0
    %540 = vmatpush1.msra.mxu0 %v483
    %541 = vmatprep.subr.mxu0 0.0
    %542 = vmatpush1.msra.mxu0 %v484
    %543 = vmatprep.subr.mxu0 0.0
    %544 = vmatpush1.msra.mxu0 %v485
    %545 = vmatprep.subr.mxu0 0.0
    %546 = vmatpush1.msra.mxu0 %v486
    %547 = vmatprep.subr.mxu0 0.0
    %548 = vmatpush1.msra.mxu0 %v487
    %549 = vmatprep.subr.mxu0 0.0
    %550 = vmatpush1.msra.mxu0 %v488
    %551 = vmatprep.subr.mxu0 0.0
    %552 = vmatpush1.msra.mxu0 %v489
    %553 = vmatprep.subr.mxu0 0.0
    %554 = vmatpush1.msra.mxu0 %v490
    %555 = vmatprep.subr.mxu0 0.0
    %556 = vmatpush1.msra.mxu0 %v491
    %557 = vmatprep.subr.mxu0 0.0
    %558 = vmatpush1.msra.mxu0 %v492
    %559 = vmatprep.subr.mxu0 0.0
    %560 = vmatpush1.msra.mxu0 %v493
    %561 = vmatprep.subr.mxu0 0.0
    %562 = vmatpush1.msra.mxu0 %v494
    %563 = vmatprep.subr.mxu0 0.0
    %564 = vmatpush1.msra.mxu0 %v495
    %565 = vmatprep.subr.mxu0 0.0
    %566 = vmatpush1.msra.mxu0 %v496
    %567 = vmatprep.subr.mxu0 0.0
    %568 = vmatpush1.msra.mxu0 %v497
    %569 = vmatprep.mubr.f32.mxu0 %v463
    %570 = vmatmul.mubr.f32.gmra.mrb[0].mxu0 %v462
    %v571 = vpop.f32.mrb[0].mxu0
    %v572 = vadd.f32 %v503, %v571
    %v573 = vpop.f32.mrb[0].mxu0
    %574 = vmatprep.mubr.f32.mxu0 %v465
    %575 = vmatmul.mubr.f32.gmra.mrb[0].mxu0 %v464
    %v576 = vpop.f32.mrb[0].mxu0
    %v577 = vadd.f32 %v503, %v576
    %v578 = vpop.f32.mrb[0].mxu0
    %579 = vdwg.mxu0
    %v580 = vtanh.pop %v572
    %v581 = vtanh.pop %v577
    %v582 = vld [vmem:[#allocation11] sm:$0xff]
    %v583 = vld [vmem:[#allocation11 + $0x8] sm:$0xff]
    %v584 = vld [vmem:[#allocation11 + $0x10] sm:$0xff]
    %v585 = vld [vmem:[#allocation11 + $0x18] sm:$0xff]
    %v586 = vld [vmem:[#allocation11 + $0x20] sm:$0xff]
    %v587 = vld [vmem:[#allocation11 + $0x28] sm:$0xff]
    %v588 = vld [vmem:[#allocation11 + $0x30] sm:$0xff]
    %v589 = vld [vmem:[#allocation11 + $0x38] sm:$0xff]
    %v590 = vld [vmem:[#allocation11 + $0x40] sm:$0xff]
    %v591 = vld [vmem:[#allocation11 + $0x48] sm:$0xff]
    %v592 = vld [vmem:[#allocation11 + $0x50] sm:$0xff]
    %v593 = vld [vmem:[#allocation11 + $0x58] sm:$0xff]
    %v594 = vld [vmem:[#allocation11 + $0x60] sm:$0xff]
    %v595 = vld [vmem:[#allocation11 + $0x68] sm:$0xff]
    %v596 = vld [vmem:[#allocation11 + $0x70] sm:$0xff]
    %v597 = vld [vmem:[#allocation11 + $0x78] sm:$0xff]
    %v598 = vld [vmem:[%s10] sm:$0x1]
    %v600 = vlaneseq
    %v601 = vshrl.u32 %v600, 7
    %v602 = vsub.s32 0, %v601
    %v603 = vrot.slane %v598, %v602
    %605 = vmatprep.subr.mxu0 0.0
    %606 = vmatpush1.msra.mxu0 %v582
    %607 = vmatprep.subr.mxu0 0.0
    %608 = vmatpush1.msra.mxu0 %v583
    %609 = vmatprep.subr.mxu0 0.0
    %610 = vmatpush1.msra.mxu0 %v584
    %611 = vmatprep.subr.mxu0 0.0
    %612 = vmatpush1.msra.mxu0 %v585
    %613 = vmatprep.subr.mxu0 0.0
    %614 = vmatpush1.msra.mxu0 %v586
    %615 = vmatprep.subr.mxu0 0.0
    %616 = vmatpush1.msra.mxu0 %v587
    %617 = vmatprep.subr.mxu0 0.0
    %618 = vmatpush1.msra.mxu0 %v588
    %619 = vmatprep.subr.mxu0 0.0
    %620 = vmatpush1.msra.mxu0 %v589
    %621 = vmatprep.subr.mxu0 0.0
    %622 = vmatpush1.msra.mxu0 %v590
    %623 = vmatprep.subr.mxu0 0.0
    %624 = vmatpush1.msra.mxu0 %v591
    %625 = vmatprep.subr.mxu0 0.0
    %626 = vmatpush1.msra.mxu0 %v592
    %627 = vmatprep.subr.mxu0 0.0
    %628 = vmatpush1.msra.mxu0 %v593
    %629 = vmatprep.subr.mxu0 0.0
    %630 = vmatpush1.msra.mxu0 %v594
    %631 = vmatprep.subr.mxu0 0.0
    %632 = vmatpush1.msra.mxu0 %v595
    %633 = vmatprep.subr.mxu0 0.0
    %634 = vmatpush1.msra.mxu0 %v596
    %635 = vmatprep.subr.mxu0 0.0
    %636 = vmatpush1.msra.mxu0 %v597
    %637 = vmatprep.subr.mxu0 0.0
    %638 = vmatpush1.msra.mxu0 0.0
    %639 = vmatprep.subr.mxu0 0.0
    %640 = vmatpush1.msra.mxu0 0.0
    %641 = vmatprep.subr.mxu0 0.0
    %642 = vmatpush1.msra.mxu0 0.0
    %643 = vmatprep.subr.mxu0 0.0
    %644 = vmatpush1.msra.mxu0 0.0
    %645 = vmatprep.subr.mxu0 0.0
    %646 = vmatpush1.msra.mxu0 0.0
    %647 = vmatprep.subr.mxu0 0.0
    %648 = vmatpush1.msra.mxu0 0.0
    %649 = vmatprep.subr.mxu0 0.0
    %650 = vmatpush1.msra.mxu0 0.0
    %651 = vmatprep.subr.mxu0 0.0
    %652 = vmatpush1.msra.mxu0 0.0
    %653 = vmatprep.subr.mxu0 0.0
    %654 = vmatpush1.msra.mxu0 0.0
    %655 = vmatprep.subr.mxu0 0.0
    %656 = vmatpush1.msra.mxu0 0.0
    %657 = vmatprep.subr.mxu0 0.0
    %658 = vmatpush1.msra.mxu0 0.0
    %659 = vmatprep.subr.mxu0 0.0
    %660 = vmatpush1.msra.mxu0 0.0
    %661 = vmatprep.subr.mxu0 0.0
    %662 = vmatpush1.msra.mxu0 0.0
    %663 = vmatprep.subr.mxu0 0.0
    %664 = vmatpush1.msra.mxu0 0.0
    %665 = vmatprep.subr.mxu0 0.0
    %666 = vmatpush1.msra.mxu0 0.0
    %667 = vmatprep.subr.mxu0 0.0
    %668 = vmatpush1.msra.mxu0 0.0
    %669 = vmatprep.mubr.f32.mxu0 0.0
    %670 = vmatmul.mubr.f32.gmra.mrb[0].mxu0 %v580
    %v671 = vpop.f32.mrb[0].mxu0
    %v672 = vadd.f32 %v603, %v671
    %v673 = vpop.f32.mrb[0].mxu0
    %674 = vmatprep.mubr.f32.mxu0 0.0
    %675 = vmatmul.mubr.f32.gmra.mrb[0].mxu0 %v581
    %v676 = vpop.f32.mrb[0].mxu0
    %v677 = vadd.f32 %v603, %v676
    %v678 = vpop.f32.mrb[0].mxu0
    %679 = vdwg.mxu0
    %v680 = vtanh.pop %v672
    %v681 = vtanh.pop %v677
    %v682 = vld [vmem:[#allocation13] sm:$0xff]
    %v683 = vld [vmem:[#allocation13 + $0x8] sm:$0xff]
    %v684 = vld [vmem:[#allocation13 + $0x10] sm:$0xff]
    %v685 = vld [vmem:[#allocation13 + $0x18] sm:$0xff]
    %v686 = vld [vmem:[#allocation13 + $0x20] sm:$0xff]
    %v687 = vld [vmem:[#allocation13 + $0x28] sm:$0xff]
    %v688 = vld [vmem:[#allocation13 + $0x30] sm:$0xff]
    %v689 = vld [vmem:[#allocation13 + $0x38] sm:$0xff]
    %v690 = vld [vmem:[#allocation13 + $0x40] sm:$0xff]
    %v691 = vld [vmem:[#allocation13 + $0x48] sm:$0xff]
    %v692 = vld [vmem:[#allocation13 + $0x50] sm:$0xff]
    %v693 = vld [vmem:[#allocation13 + $0x58] sm:$0xff]
    %v694 = vld [vmem:[#allocation13 + $0x60] sm:$0xff]
    %v695 = vld [vmem:[#allocation13 + $0x68] sm:$0xff]
    %v696 = vld [vmem:[#allocation13 + $0x70] sm:$0xff]
    %v697 = vld [vmem:[#allocation13 + $0x78] sm:$0xff]
    %v698 = vld [vmem:[%s12] sm:$0x1]
    %v700 = vlaneseq
    %v701 = vshrl.u32 %v700, 7
    %v702 = vsub.s32 0, %v701
    %v703 = vrot.slane %v698, %v702
    %705 = vmatprep.subr.mxu0 0.0
    %706 = vmatpush1.msra.mxu0 %v682
    %707 = vmatprep.subr.mxu0 0.0
    %708 = vmatpush1.msra.mxu0 %v683
    %709 = vmatprep.subr.mxu0 0.0
    %710 = vmatpush1.msra.mxu0 %v684
    %711 = vmatprep.subr.mxu0 0.0
    %712 = vmatpush1.msra.mxu0 %v685
    %713 = vmatprep.subr.mxu0 0.0
    %714 = vmatpush1.msra.mxu0 %v686
    %715 = vmatprep.subr.mxu0 0.0
    %716 = vmatpush1.msra.mxu0 %v687
    %717 = vmatprep.subr.mxu0 0.0
    %718 = vmatpush1.msra.mxu0 %v688
    %719 = vmatprep.subr.mxu0 0.0
    %720 = vmatpush1.msra.mxu0 %v689
    %721 = vmatprep.subr.mxu0 0.0
    %722 = vmatpush1.msra.mxu0 %v690
    %723 = vmatprep.subr.mxu0 0.0
    %724 = vmatpush1.msra.mxu0 %v691
    %725 = vmatprep.subr.mxu0 0.0
    %726 = vmatpush1.msra.mxu0 %v692
    %727 = vmatprep.subr.mxu0 0.0
    %728 = vmatpush1.msra.mxu0 %v693
    %729 = vmatprep.subr.mxu0 0.0
    %730 = vmatpush1.msra.mxu0 %v694
    %731 = vmatprep.subr.mxu0 0.0
    %732 = vmatpush1.msra.mxu0 %v695
    %733 = vmatprep.subr.mxu0 0.0
    %734 = vmatpush1.msra.mxu0 %v696
    %735 = vmatprep.subr.mxu0 0.0
    %736 = vmatpush1.msra.mxu0 %v697
    %737 = vmatprep.subr.mxu0 0.0
    %738 = vmatpush1.msra.mxu0 0.0
    %739 = vmatprep.subr.mxu0 0.0
    %740 = vmatpush1.msra.mxu0 0.0
    %741 = vmatprep.subr.mxu0 0.0
    %742 = vmatpush1.msra.mxu0 0.0
    %743 = vmatprep.subr.mxu0 0.0
    %744 = vmatpush1.msra.mxu0 0.0
    %745 = vmatprep.subr.mxu0 0.0
    %746 = vmatpush1.msra.mxu0 0.0
    %747 = vmatprep.subr.mxu0 0.0
    %748 = vmatpush1.msra.mxu0 0.0
    %749 = vmatprep.subr.mxu0 0.0
    %750 = vmatpush1.msra.mxu0 0.0
    %751 = vmatprep.subr.mxu0 0.0
    %752 = vmatpush1.msra.mxu0 0.0
    %753 = vmatprep.subr.mxu0 0.0
    %754 = vmatpush1.msra.mxu0 0.0
    %755 = vmatprep.subr.mxu0 0.0
    %756 = vmatpush1.msra.mxu0 0.0
    %757 = vmatprep.subr.mxu0 0.0
    %758 = vmatpush1.msra.mxu0 0.0
    %759 = vmatprep.subr.mxu0 0.0
    %760 = vmatpush1.msra.mxu0 0.0
    %761 = vmatprep.subr.mxu0 0.0
    %762 = vmatpush1.msra.mxu0 0.0
    %763 = vmatprep.subr.mxu0 0.0
    %764 = vmatpush1.msra.mxu0 0.0
    %765 = vmatprep.subr.mxu0 0.0
    %766 = vmatpush1.msra.mxu0 0.0
    %767 = vmatprep.subr.mxu0 0.0
    %768 = vmatpush1.msra.mxu0 0.0
    %769 = vmatprep.mubr.f32.mxu0 0.0
    %770 = vmatmul.mubr.f32.gmra.mrb[0].mxu0 %v680
    %v771 = vpop.f32.mrb[0].mxu0
    %v772 = vadd.f32 %v703, %v771
    %v773 = vpop.f32.mrb[0].mxu0
    %774 = vmatprep.mubr.f32.mxu0 0.0
    %775 = vmatmul.mubr.f32.gmra.mrb[0].mxu0 %v681
    %v776 = vpop.f32.mrb[0].mxu0
    %v777 = vadd.f32 %v703, %v776
    %v778 = vpop.f32.mrb[0].mxu0
    %779 = vdwg.mxu0
    %v780 = vxor.u32 %v772, 2147483648
    %v781 = vxor.u32 %v777, 2147483648
    %v782 = vmul.f32 %v780, 1.442695
    %v783 = vpow.pop %v782
    %v784 = vmul.f32 %v781, 1.442695
    %v785 = vpow.pop %v784
    %v786 = vadd.f32 %v783, 1.0
    %v787 = vadd.f32 %v785, 1.0
    %v788 = vrcp.pop %v786
    %v789 = vmul.f32 1.0, %v788
    %v790 = vrcp.pop %v787
    %v791 = vmul.f32 1.0, %v790
    %792 = vst [vmem:[#allocation14] sm:$0xff] %v789
    %793 = vst [vmem:[#allocation14 + $0x8] sm:$0xff] %v791
    // Predicated region
    $region82: #{tpu_custom_call.1} parent=1 // pred_check
      _
    $region83: #{tpu_custom_call.1} parent=1 // pred_check_branch
      %795 = sbr.rel (0) target = $region85
    $region84: #{tpu_custom_call.1} parent=1 // pred_region
      %s797 = ssub.s32 256, 256
      %798 = vsyncadd [#allocation4], %s797
      %s799 = sshll.u32 [#allocation14], 4
      %s800 = int_to_ptr.vmem [resolvable:$true] %s799
      %805 = dma.vmem_to_hbm [thread:$0]  %s800, 256, %s13, [#allocation4], 128, 128, 8
    $region85: #{tpu_custom_call.1} parent=1 // pred_fallthru
      _
    // Predicated region
    $region86: #{tpu_custom_call.1} parent=1 // pred_check
      _
    $region87: #{tpu_custom_call.1} parent=1 // pred_check_branch
      %807 = sbr.rel (0) target = $region89
    $region88: #{tpu_custom_call.1} parent=1 // pred_region
      %808 = dma.done [#allocation4], 256
    $region89: #{tpu_custom_call.1} parent=1 // pred_fallthru
      _
    %809 = vsyncpa [#allocation3], 1
    %810 = vsyncpa [#allocation6], 1
    %811 = vsyncpa [#allocation9], 1
    %812 = vsyncpa [#allocation12], 1
    %813 = vsyncpa [#allocation4], 1

</llo_original>
